<compile_context>
chip_gen: v7x
topology: tpu7x:2x2x1
jax: 0.10.0
libtpu: 0.0.40
codegen_flags: <defaults>
</compile_context>

<pallas_src>
import jax
import jax.numpy as jnp
from jax.experimental import pallas as pl
from jax.experimental.pallas import tpu as pltpu


def mlp_kernel(x_ref, w1_ref, b1_ref, w2_ref, b2_ref, o_ref):
    # fc1: x @ W1 (MXU, f32 accumulate), bias added in f32.
    x = x_ref[...].astype(w1_ref.dtype)
    h = jnp.dot(x, w1_ref[...], preferred_element_type=jnp.float32)
    h = h + b1_ref[...]
    # Exact sigmoid: exp on the EUP, exact reciprocal (kernel is not EUP/VALU
    # bound, so the approximate reciprocal buys nothing).
    h = 1.0 / (1.0 + jnp.exp(-h))
    # fc2: h @ W2 (MXU, f32 accumulate), bias added in f32.
    y = jnp.dot(h.astype(w2_ref.dtype), w2_ref[...],
                preferred_element_type=jnp.float32)
    y = y + b2_ref[...]
    o_ref[...] = y.astype(o_ref.dtype)


def _round_up(n, m):
    return ((n + m - 1) // m) * m


def prepare_params(w1, b1, w2, b2, *, dtype=jnp.bfloat16):
    """One-time parameter preparation (hoisted out of the per-call path).

    Weights are cast to `dtype` (bf16 recommended: native MXU rate, half the
    HBM/VMEM bytes); biases stay f32 and are added to the f32 accumulator.
    """
    w1 = jnp.asarray(w1, dtype)
    w2 = jnp.asarray(w2, dtype)
    b1 = jnp.asarray(b1, jnp.float32).reshape(1, -1)
    b2 = jnp.asarray(b2, jnp.float32).reshape(1, -1)
    return w1, b1, w2, b2


def mlp_forward(x, w1, b1, w2, b2, *, batch_tile=512):
    """x: [B, D_in]; w1: [D_in, H]; b1: [1, H]; w2: [H, D_out]; b2: [1, D_out].

    Weights/biases should come from prepare_params() so no per-call work is
    spent on them.  Only the batch (sublane) dim of x is ever padded.
    """
    B, D_in = x.shape
    H = w1.shape[1]
    D_out = w2.shape[1]

    SUB = 8  # sublane granularity for block shapes

    # --- batch tiling ------------------------------------------------------
    Bp = _round_up(B, SUB)
    bt = min(batch_tile, Bp)
    # v7x has 2 TensorCores: keep >= 2 grid steps whenever the batch allows so
    # the "parallel" axis can be sharded across both cores (no-op on v5e/v6e).
    if Bp >= 2 * SUB:
        bt = min(bt, (Bp // 2) // SUB * SUB)
    bt = max(SUB, bt // SUB * SUB)
    # Even out the split so padding is minimal.
    n_steps = (Bp + bt - 1) // bt
    bt = _round_up((Bp + n_steps - 1) // n_steps, SUB)
    Bp = n_steps * bt

    if Bp != B:
        x = jnp.pad(x, ((0, Bp - B), (0, 0)))  # padded rows sliced off below
    grid = (n_steps,)

    # --- advisory cost (logical, unpadded shapes) ---------------------------
    isz = lambda a: jnp.dtype(a.dtype).itemsize
    flops = 2 * B * (D_in * H + H * D_out)
    transcendentals = 2 * B * H  # exp + reciprocal per hidden activation
    bytes_accessed = (
        B * D_in * isz(x) + w1.size * isz(w1) + b1.size * isz(b1)
        + w2.size * isz(w2) + b2.size * isz(b2) + B * D_out * isz(x)
    )

    out = pl.pallas_call(
        mlp_kernel,
        out_shape=jax.ShapeDtypeStruct((Bp, D_out), x.dtype),
        grid_spec=pltpu.PrefetchScalarGridSpec(
            num_scalar_prefetch=0,
            grid=grid,
            in_specs=[
                # x tile per grid step; last dim == full array dim (legal).
                pl.BlockSpec((bt, D_in), lambda i: (i, 0)),
                # Weights/biases resident across grid steps, natural shapes
                # (full-array blocks); Mosaic pads tiles in VMEM.
                pl.BlockSpec((D_in, H), lambda i: (0, 0)),
                pl.BlockSpec((1, H), lambda i: (0, 0)),
                pl.BlockSpec((H, D_out), lambda i: (0, 0)),
                pl.BlockSpec((1, D_out), lambda i: (0, 0)),
            ],
            out_specs=pl.BlockSpec((bt, D_out), lambda i: (i, 0)),
        ),
        compiler_params=pltpu.CompilerParams(
            dimension_semantics=("parallel",),
        ),
        cost_estimate=pl.CostEstimate(
            flops=flops,
            transcendentals=transcendentals,
            bytes_accessed=bytes_accessed,
        ),
    )(x, w1, b1, w2, b2)

    return out if Bp == B else out[:B]


def reference_forward(x, w1, b1, w2, b2):
    h = jax.nn.sigmoid(x @ w1 + b1)
    return h @ w2 + b2


if __name__ == "__main__":
    # Shapes consistent with the module:
    # input_size=32, hidden_layer_size=64, output_size=16, batch=8
    B, D_in, H, D_out = 8, 32, 64, 16

    key = jax.random.PRNGKey(0)
    k_x, k_w1, k_b1, k_w2, k_b2 = jax.random.split(key, 5)

    x = jax.random.normal(k_x, (B, D_in), dtype=jnp.float32)
    # Deterministic parameter init (PyTorch-style uniform bounds).
    bound1 = 1.0 / jnp.sqrt(D_in)
    w1 = jax.random.uniform(k_w1, (D_in, H), jnp.float32, -bound1, bound1)
    b1 = jax.random.uniform(k_b1, (H,), jnp.float32, -bound1, bound1)
    bound2 = 1.0 / jnp.sqrt(H)
    w2 = jax.random.uniform(k_w2, (H, D_out), jnp.float32, -bound2, bound2)
    b2 = jax.random.uniform(k_b2, (D_out,), jnp.float32, -bound2, bound2)

    ref = reference_forward(x, w1, b1, w2, b2)

    # f32 parameter path (exact sigmoid, f32 MXU dots).  Small slack covers
    # MXU pass-count differences between the XLA reference dot and the Pallas
    # dot for f32 operands.
    p32 = prepare_params(w1, b1, w2, b2, dtype=jnp.float32)
    out32 = jax.block_until_ready(mlp_forward(x, *p32))
    assert out32.shape == (B, D_out)
    assert jnp.allclose(out32, ref, atol=5e-3, rtol=5e-3)

    # bf16 parameter path (recommended default: native MXU dtype, half the
    # HBM bytes).  f32 accumulation keeps the error ~1e-2 absolute worst case.
    pbf = prepare_params(w1, b1, w2, b2, dtype=jnp.bfloat16)
    outbf = jax.block_until_ready(mlp_forward(x, *pbf))
    assert outbf.shape == (B, D_out)
    assert jnp.allclose(outbf, ref, atol=2e-2, rtol=2e-2)

    print("KERNEL_OK")
</pallas_src>

<mosaic_0001>
module attributes {stable_mosaic.version = 11 : i64} {
  func.func @mlp_kernel(%arg0: i32, %arg1: memref<8x32xf32, #tpu.memory_space<vmem>>, %arg2: memref<32x64xf32, #tpu.memory_space<vmem>>, %arg3: memref<1x64xf32, #tpu.memory_space<vmem>>, %arg4: memref<64x16xf32, #tpu.memory_space<vmem>>, %arg5: memref<1x16xf32, #tpu.memory_space<vmem>>, %arg6: memref<8x16xf32, #tpu.memory_space<vmem>>) attributes {dimension_semantics = [#tpu.dimension_semantics<parallel>], iteration_bounds = array<i64: 1>, scalar_prefetch = 0 : i64, scratch_operands = 0 : i64, tpu.core_type = #tpu.core_type<tc>, window_params = [{transform_indices = @transform_0, window_bounds = array<i64: 8, 32>}, {pipeline_mode = #tpu.pipeline_mode<synchronous>, transform_indices = @transform_1, window_bounds = array<i64: 32, 64>}, {pipeline_mode = #tpu.pipeline_mode<synchronous>, transform_indices = @transform_2, window_bounds = array<i64: 1, 64>}, {pipeline_mode = #tpu.pipeline_mode<synchronous>, transform_indices = @transform_3, window_bounds = array<i64: 64, 16>}, {pipeline_mode = #tpu.pipeline_mode<synchronous>, transform_indices = @transform_4, window_bounds = array<i64: 1, 16>}, {transform_indices = @transform_5, window_bounds = array<i64: 8, 16>}]} {
    %c0 = arith.constant 0 : index
    %c0_0 = arith.constant 0 : index
    %0 = vector.load %arg1[%c0, %c0_0] : memref<8x32xf32, #tpu.memory_space<vmem>>, vector<8x32xf32>
    %c0_1 = arith.constant 0 : index
    %c0_2 = arith.constant 0 : index
    %1 = vector.load %arg2[%c0_1, %c0_2] : memref<32x64xf32, #tpu.memory_space<vmem>>, vector<32x64xf32>
    %cst = arith.constant dense<0.000000e+00> : vector<8x64xf32>
    %2 = tpu.matmul %0, %1, %cst {dimension_numbers = #tpu.dot_dimension_numbers<[1], [0], [0], [1], [0, 0, 1, 1], [], []>} : vector<8x32xf32>, vector<32x64xf32>, vector<8x64xf32> -> vector<8x64xf32>
    %c0_3 = arith.constant 0 : index
    %c0_4 = arith.constant 0 : index
    %3 = vector.load %arg3[%c0_3, %c0_4] : memref<1x64xf32, #tpu.memory_space<vmem>>, vector<1x64xf32>
    %4 = vector.broadcast %3 : vector<1x64xf32> to vector<8x64xf32>
    %5 = arith.addf %2, %4 : vector<8x64xf32>
    %cst_5 = arith.constant 0.000000e+00 : f32
    %6 = vector.broadcast %cst_5 : f32 to vector<8x64xf32>
    %7 = arith.subf %6, %5 : vector<8x64xf32>
    %8 = math.exp %7 : vector<8x64xf32>
    %cst_6 = arith.constant 1.000000e+00 : f32
    %9 = vector.broadcast %cst_6 : f32 to vector<8x64xf32>
    %10 = arith.addf %9, %8 : vector<8x64xf32>
    %cst_7 = arith.constant 1.000000e+00 : f32
    %11 = vector.broadcast %cst_7 : f32 to vector<8x64xf32>
    %12 = arith.divf %11, %10 : vector<8x64xf32>
    %c0_8 = arith.constant 0 : index
    %c0_9 = arith.constant 0 : index
    %13 = vector.load %arg4[%c0_8, %c0_9] : memref<64x16xf32, #tpu.memory_space<vmem>>, vector<64x16xf32>
    %cst_10 = arith.constant dense<0.000000e+00> : vector<8x16xf32>
    %14 = tpu.matmul %12, %13, %cst_10 {dimension_numbers = #tpu.dot_dimension_numbers<[1], [0], [0], [1], [0, 0, 1, 1], [], []>} : vector<8x64xf32>, vector<64x16xf32>, vector<8x16xf32> -> vector<8x16xf32>
    %c0_11 = arith.constant 0 : index
    %c0_12 = arith.constant 0 : index
    %15 = vector.load %arg5[%c0_11, %c0_12] : memref<1x16xf32, #tpu.memory_space<vmem>>, vector<1x16xf32>
    %16 = vector.broadcast %15 : vector<1x16xf32> to vector<8x16xf32>
    %17 = arith.addf %14, %16 : vector<8x16xf32>
    %c0_13 = arith.constant 0 : index
    %c0_14 = arith.constant 0 : index
    %18 = vector.load %arg6[%c0_13, %c0_14] : memref<8x16xf32, #tpu.memory_space<vmem>>, vector<8x16xf32>
    tpu.vector_store %arg6[%c0_13, %c0_14], %17 {strides = array<i32>} : memref<8x16xf32, #tpu.memory_space<vmem>>, vector<8x16xf32>,
    return
  }
  func.func @transform_0(%arg0: i32) -> (i32, i32) {
    %c0_i32 = arith.constant 0 : i32
    %c0_i32_0 = arith.constant 0 : i32
    return %arg0, %c0_i32 : i32, i32
  }
  func.func @transform_1(%arg0: i32) -> (i32, i32) {
    %c0_i32 = arith.constant 0 : i32
    %c0_i32_0 = arith.constant 0 : i32
    %c0_i32_1 = arith.constant 0 : i32
    return %c0_i32, %c0_i32_0 : i32, i32
  }
  func.func @transform_2(%arg0: i32) -> (i32, i32) {
    %c0_i32 = arith.constant 0 : i32
    %c0_i32_0 = arith.constant 0 : i32
    %c0_i32_1 = arith.constant 0 : i32
    return %c0_i32, %c0_i32_0 : i32, i32
  }
  func.func @transform_3(%arg0: i32) -> (i32, i32) {
    %c0_i32 = arith.constant 0 : i32
    %c0_i32_0 = arith.constant 0 : i32
    %c0_i32_1 = arith.constant 0 : i32
    return %c0_i32, %c0_i32_0 : i32, i32
  }
  func.func @transform_4(%arg0: i32) -> (i32, i32) {
    %c0_i32 = arith.constant 0 : i32
    %c0_i32_0 = arith.constant 0 : i32
    %c0_i32_1 = arith.constant 0 : i32
    return %c0_i32, %c0_i32_0 : i32, i32
  }
  func.func @transform_5(%arg0: i32) -> (i32, i32) {
    %c0_i32 = arith.constant 0 : i32
    %c0_i32_0 = arith.constant 0 : i32
    return %arg0, %c0_i32 : i32, i32
  }
}

</mosaic_0001>

<llo_original>
// kernel: tpu_custom_call.1
$region0: #{tpu_custom_call.1}
  #allocation0 [shape = 'u32[]', space=smem, size = 0x4, offset = 0x4, fixed_abs, tag = 'smem constant byte address 0x4 - core index']
  #allocation1 [shape = 'u32[144,128]{1,0:T(1,128)}', space=vmem, size = 0x12000, scoped, tag = 'internal scratch']
  %s0 = inlined_call_operand.vmem [shape: f32[8,32], index: 0, kind: input, shape index: {}]
  %s1 = inlined_call_operand.vmem [shape: f32[32,64], index: 1, kind: input, shape index: {}]
  %s2 = inlined_call_operand.vmem [shape: f32[1,64], index: 2, kind: input, shape index: {}]
  %s3 = inlined_call_operand.vmem [shape: f32[64,16], index: 3, kind: input, shape index: {}]
  %s4 = inlined_call_operand.vmem [shape: f32[1,16], index: 4, kind: input, shape index: {}]
  %s5 = inlined_call_operand.hbm [shape: f32[8,16], index: 5, kind: output, shape index: {}]
  %s6 = sld [smem:[#allocation0]]
  $region30: #{tpu_custom_call.1} parent=0
    _
  %s8 = ssub.s32 1, %s6
  %s9 = scalar_select 0, %s8, %s6
  $region1: #{tpu_custom_call.1} parent=0
    #allocation2 [shape = 'u8[4096]{0}', space=vmem, size = 0x1000, scoped, tag = 'output window, operand 0, single buffered']
    #allocation3 [shape = 's32[1]{0}', space=sflag, size = 0x4, scoped, tag = 'scoped memory for tpu_custom_call.1']
    %10 = vsyncpa [#allocation3], 0
    // Predicated region
    $region2: #{tpu_custom_call.1} parent=1 // pred_check
      _
    $region3: #{tpu_custom_call.1} parent=1 // pred_check_branch
      %12 = sbr.rel (0) target = $region5
    $region4: #{tpu_custom_call.1} parent=1 // pred_region
      _
    $region5: #{tpu_custom_call.1} parent=1 // pred_fallthru
      _
    // Predicated region
    $region6: #{tpu_custom_call.1} parent=1 // pred_check
      _
    $region7: #{tpu_custom_call.1} parent=1 // pred_check_branch
      %14 = sbr.rel (0) target = $region9
    $region8: #{tpu_custom_call.1} parent=1 // pred_region
      _
    $region9: #{tpu_custom_call.1} parent=1 // pred_fallthru
      _
    // Predicated region
    $region10: #{tpu_custom_call.1} parent=1 // pred_check
      _
    $region11: #{tpu_custom_call.1} parent=1 // pred_check_branch
      %16 = sbr.rel (0) target = $region13
    $region12: #{tpu_custom_call.1} parent=1 // pred_region
      _
    $region13: #{tpu_custom_call.1} parent=1 // pred_fallthru
      _
    // Predicated region
    $region14: #{tpu_custom_call.1} parent=1 // pred_check
      _
    $region15: #{tpu_custom_call.1} parent=1 // pred_check_branch
      %18 = sbr.rel (0) target = $region17
    $region16: #{tpu_custom_call.1} parent=1 // pred_region
      _
    $region17: #{tpu_custom_call.1} parent=1 // pred_fallthru
      _
    // Predicated region
    $region18: #{tpu_custom_call.1} parent=1 // pred_check
      _
    $region19: #{tpu_custom_call.1} parent=1 // pred_check_branch
      %20 = sbr.rel (0) target = $region21
    $region20: #{tpu_custom_call.1} parent=1 // pred_region
      _
    $region21: #{tpu_custom_call.1} parent=1 // pred_fallthru
      _
    %v21 = vld [vmem:[%s0] sm:$0xff]
    %v22 = vld [vmem:[%s1] sm:$0xff]
    %v23 = vld [vmem:[%s1 + $0x8] sm:$0xff]
    %v24 = vld [vmem:[%s1 + $0x10] sm:$0xff]
    %v25 = vld [vmem:[%s1 + $0x18] sm:$0xff]
    %v26 = vld [vmem:[%s2] sm:$0x1]
    %v28 = vlaneseq
    %v29 = vshrl.u32 %v28, 7
    %v30 = vsub.s32 0, %v29
    %v31 = vrot.slane %v26, %v30
    %vm33 = vcmask 261120
    %v35 = vsel %vm33, %v21, 0
    %37 = vmatprep.subr.mxu0 0.0
    %38 = vmatpush1.msra.mxu0 %v22
    %39 = vmatprep.subr.mxu0 0.0
    %40 = vmatpush1.msra.mxu0 %v23
    %41 = vmatprep.subr.mxu0 0.0
    %42 = vmatpush1.msra.mxu0 %v24
    %43 = vmatprep.subr.mxu0 0.0
    %44 = vmatpush1.msra.mxu0 %v25
    %45 = vmatprep.subr.mxu0 0.0
    %46 = vmatpush1.msra.mxu0 0.0
    %47 = vmatprep.subr.mxu0 0.0
    %48 = vmatpush1.msra.mxu0 0.0
    %49 = vmatprep.subr.mxu0 0.0
    %50 = vmatpush1.msra.mxu0 0.0
    %51 = vmatprep.subr.mxu0 0.0
    %52 = vmatpush1.msra.mxu0 0.0
    %53 = vmatprep.subr.mxu0 0.0
    %54 = vmatpush1.msra.mxu0 0.0
    %55 = vmatprep.subr.mxu0 0.0
    %56 = vmatpush1.msra.mxu0 0.0
    %57 = vmatprep.subr.mxu0 0.0
    %58 = vmatpush1.msra.mxu0 0.0
    %59 = vmatprep.subr.mxu0 0.0
    %60 = vmatpush1.msra.mxu0 0.0
    %61 = vmatprep.subr.mxu0 0.0
    %62 = vmatpush1.msra.mxu0 0.0
    %63 = vmatprep.subr.mxu0 0.0
    %64 = vmatpush1.msra.mxu0 0.0
    %65 = vmatprep.subr.mxu0 0.0
    %66 = vmatpush1.msra.mxu0 0.0
    %67 = vmatprep.subr.mxu0 0.0
    %68 = vmatpush1.msra.mxu0 0.0
    %69 = vmatprep.subr.mxu0 0.0
    %70 = vmatpush1.msra.mxu0 0.0
    %71 = vmatprep.subr.mxu0 0.0
    %72 = vmatpush1.msra.mxu0 0.0
    %73 = vmatprep.subr.mxu0 0.0
    %74 = vmatpush1.msra.mxu0 0.0
    %75 = vmatprep.subr.mxu0 0.0
    %76 = vmatpush1.msra.mxu0 0.0
    %77 = vmatprep.subr.mxu0 0.0
    %78 = vmatpush1.msra.mxu0 0.0
    %79 = vmatprep.subr.mxu0 0.0
    %80 = vmatpush1.msra.mxu0 0.0
    %81 = vmatprep.subr.mxu0 0.0
    %82 = vmatpush1.msra.mxu0 0.0
    %83 = vmatprep.subr.mxu0 0.0
    %84 = vmatpush1.msra.mxu0 0.0
    %85 = vmatprep.subr.mxu0 0.0
    %86 = vmatpush1.msra.mxu0 0.0
    %87 = vmatprep.subr.mxu0 0.0
    %88 = vmatpush1.msra.mxu0 0.0
    %89 = vmatprep.subr.mxu0 0.0
    %90 = vmatpush1.msra.mxu0 0.0
    %91 = vmatprep.subr.mxu0 0.0
    %92 = vmatpush1.msra.mxu0 0.0
    %93 = vmatprep.subr.mxu0 0.0
    %94 = vmatpush1.msra.mxu0 0.0
    %95 = vmatprep.subr.mxu0 0.0
    %96 = vmatpush1.msra.mxu0 0.0
    %97 = vmatprep.subr.mxu0 0.0
    %98 = vmatpush1.msra.mxu0 0.0
    %99 = vmatprep.subr.mxu0 0.0
    %100 = vmatpush1.msra.mxu0 0.0
    %101 = vmatprep.mubr.f32.mxu0 0.0
    %102 = vmatmul.mubr.f32.gmra.mrb[0].mxu0 %v35
    %v103 = vpop.f32.mrb[0].mxu0
    %v104 = vadd.f32 %v31, %v103
    %v105 = vpop.f32.mrb[0].mxu0
    %106 = vdwg.mxu0
    %v107 = vsub.f32 0.0, %v104
    %v108 = vmul.f32 %v107, 1.442695
    %v109 = vpow.pop %v108
    %v110 = vadd.f32 %v109, 1.0
    %v111 = vrcp.pop %v110
    %v112 = vmul.f32 1.0, %v111
    %v113 = vld [vmem:[%s3] sm:$0xff]
    %v114 = vld [vmem:[%s3 + $0x8] sm:$0xff]
    %v115 = vld [vmem:[%s3 + $0x10] sm:$0xff]
    %v116 = vld [vmem:[%s3 + $0x18] sm:$0xff]
    %v117 = vld [vmem:[%s3 + $0x20] sm:$0xff]
    %v118 = vld [vmem:[%s3 + $0x28] sm:$0xff]
    %v119 = vld [vmem:[%s3 + $0x30] sm:$0xff]
    %v120 = vld [vmem:[%s3 + $0x38] sm:$0xff]
    %v121 = vld [vmem:[%s4] sm:$0x1]
    %v123 = vlaneseq
    %v124 = vshrl.u32 %v123, 7
    %v125 = vsub.s32 0, %v124
    %v126 = vrot.slane %v121, %v125
    %vm128 = vcmask 523264
    %v130 = vsel %vm128, %v112, 0
    %132 = vmatprep.subr.mxu0 0.0
    %133 = vmatpush1.msra.mxu0 %v113
    %134 = vmatprep.subr.mxu0 0.0
    %135 = vmatpush1.msra.mxu0 %v114
    %136 = vmatprep.subr.mxu0 0.0
    %137 = vmatpush1.msra.mxu0 %v115
    %138 = vmatprep.subr.mxu0 0.0
    %139 = vmatpush1.msra.mxu0 %v116
    %140 = vmatprep.subr.mxu0 0.0
    %141 = vmatpush1.msra.mxu0 %v117
    %142 = vmatprep.subr.mxu0 0.0
    %143 = vmatpush1.msra.mxu0 %v118
    %144 = vmatprep.subr.mxu0 0.0
    %145 = vmatpush1.msra.mxu0 %v119
    %146 = vmatprep.subr.mxu0 0.0
    %147 = vmatpush1.msra.mxu0 %v120
    %148 = vmatprep.subr.mxu0 0.0
    %149 = vmatpush1.msra.mxu0 0.0
    %150 = vmatprep.subr.mxu0 0.0
    %151 = vmatpush1.msra.mxu0 0.0
    %152 = vmatprep.subr.mxu0 0.0
    %153 = vmatpush1.msra.mxu0 0.0
    %154 = vmatprep.subr.mxu0 0.0
    %155 = vmatpush1.msra.mxu0 0.0
    %156 = vmatprep.subr.mxu0 0.0
    %157 = vmatpush1.msra.mxu0 0.0
    %158 = vmatprep.subr.mxu0 0.0
    %159 = vmatpush1.msra.mxu0 0.0
    %160 = vmatprep.subr.mxu0 0.0
    %161 = vmatpush1.msra.mxu0 0.0
    %162 = vmatprep.subr.mxu0 0.0
    %163 = vmatpush1.msra.mxu0 0.0
    %164 = vmatprep.subr.mxu0 0.0
    %165 = vmatpush1.msra.mxu0 0.0
    %166 = vmatprep.subr.mxu0 0.0
    %167 = vmatpush1.msra.mxu0 0.0
    %168 = vmatprep.subr.mxu0 0.0
    %169 = vmatpush1.msra.mxu0 0.0
    %170 = vmatprep.subr.mxu0 0.0
    %171 = vmatpush1.msra.mxu0 0.0
    %172 = vmatprep.subr.mxu0 0.0
    %173 = vmatpush1.msra.mxu0 0.0
    %174 = vmatprep.subr.mxu0 0.0
    %175 = vmatpush1.msra.mxu0 0.0
    %176 = vmatprep.subr.mxu0 0.0
    %177 = vmatpush1.msra.mxu0 0.0
    %178 = vmatprep.subr.mxu0 0.0
    %179 = vmatpush1.msra.mxu0 0.0
    %180 = vmatprep.subr.mxu0 0.0
    %181 = vmatpush1.msra.mxu0 0.0
    %182 = vmatprep.subr.mxu0 0.0
    %183 = vmatpush1.msra.mxu0 0.0
    %184 = vmatprep.subr.mxu0 0.0
    %185 = vmatpush1.msra.mxu0 0.0
    %186 = vmatprep.subr.mxu0 0.0
    %187 = vmatpush1.msra.mxu0 0.0
    %188 = vmatprep.subr.mxu0 0.0
    %189 = vmatpush1.msra.mxu0 0.0
    %190 = vmatprep.subr.mxu0 0.0
    %191 = vmatpush1.msra.mxu0 0.0
    %192 = vmatprep.subr.mxu0 0.0
    %193 = vmatpush1.msra.mxu0 0.0
    %194 = vmatprep.subr.mxu0 0.0
    %195 = vmatpush1.msra.mxu0 0.0
    %196 = vmatprep.mubr.f32.mxu0 0.0
    %197 = vmatmul.mubr.f32.gmra.mrb[0].mxu0 %v130
    %v198 = vpop.f32.mrb[0].mxu0
    %v199 = vadd.f32 %v126, %v198
    %v200 = vpop.f32.mrb[0].mxu0
    %201 = vdwg.mxu0
    %vm202 = vcmask 130048
    %203 = vst.msk [vmem:[#allocation2] sm:$0xff] %vm202, %v199
    // Predicated region
    $region22: #{tpu_custom_call.1} parent=1 // pred_check
      _
    $region23: #{tpu_custom_call.1} parent=1 // pred_check_branch
      %205 = sbr.rel (0) target = $region25
    $region24: #{tpu_custom_call.1} parent=1 // pred_region
      %s207 = ssub.s32 128, 128
      %208 = vsyncadd [#allocation3], %s207
      %s210 = sshll.u32 [#allocation2], 4
      %s211 = int_to_ptr.vmem [resolvable:$true] %s210
      %213 = dma.vmem_to_hbm [thread:$0]  %s211, 128, %s5, [#allocation3]
    $region25: #{tpu_custom_call.1} parent=1 // pred_fallthru
      _
    // Predicated region
    $region26: #{tpu_custom_call.1} parent=1 // pred_check
      _
    $region27: #{tpu_custom_call.1} parent=1 // pred_check_branch
      %215 = sbr.rel (0) target = $region29
    $region28: #{tpu_custom_call.1} parent=1 // pred_region
      %216 = dma.done [#allocation3], 128
    $region29: #{tpu_custom_call.1} parent=1 // pred_fallthru
      _
    %217 = vsyncpa [#allocation3], 1

</llo_original>
